<compile_context>
chip_gen: v7x
topology: tpu7x:2x2x1
jax: 0.10.0
libtpu: 0.0.40
codegen_flags: <defaults>
</compile_context>

<pallas_src>
import jax
import jax.numpy as jnp
from jax.experimental import pallas as pl
from jax.experimental.pallas import tpu as pltpu


def _round_up(x: int, m: int) -> int:
    return ((x + m - 1) // m) * m


# ---------------------------------------------------------------------------
# Kernel: one batch tile per grid step.
#   hidden = tanh(z @ W1z + y @ W1y + b1)    (f32 accumulate, f32 tanh)
#   out    = hidden @ W2 + b2
# ---------------------------------------------------------------------------
def _decoder_kernel(z_ref, y_ref, w1z_ref, w1y_ref, b1_ref, w2_ref, b2_ref,
                    out_ref):
    h = jnp.dot(z_ref[...], w1z_ref[...], preferred_element_type=jnp.float32)
    h = h + jnp.dot(y_ref[...], w1y_ref[...],
                    preferred_element_type=jnp.float32)
    h = jnp.tanh(h + b1_ref[...])                          # (TB, Hp), f32
    out_ref[...] = (
        jnp.dot(h.astype(w2_ref.dtype), w2_ref[...],
                preferred_element_type=jnp.float32)
        + b2_ref[...]
    ).astype(out_ref.dtype)                                # (TB, output_dim)


# ---------------------------------------------------------------------------
# One-time weight preprocessing (hoisted out of the per-call forward path).
# ---------------------------------------------------------------------------
def prepare_decoder_params(fc1_w, fc1_b, fc2_w, fc2_b, latent_dim,
                           *, compute_dtype=jnp.float32, hidden_align=128):
    """Pre-transpose / split / zero-pad the PyTorch nn.Linear parameters.

    fc1_w: (hidden, latent+cond)   fc1_b: (hidden,)
    fc2_w: (output, hidden)        fc2_b: (output,)

    Returns (w1z, w1y, b1, w2, b2) with:
      w1z: (latent, Hp)   w1y: (cond, Hp)   b1: (1, Hp)   f32 bias
      w2 : (Hp, output)   b2: (1, output)   f32 bias
    Hp = hidden rounded up to `hidden_align` (lane-dense; zero padding is
    exact: tanh(0)=0 hits zero rows of W2).  Use hidden_align=256 on v6e/v7x
    when the real hidden dim is >= 256.
    """
    hidden_dim, in1 = fc1_w.shape
    output_dim = fc2_w.shape[0]
    assert 0 < latent_dim < in1
    hp = _round_up(hidden_dim, hidden_align)

    w1 = jnp.pad(fc1_w.T.astype(jnp.float32),
                 ((0, 0), (0, hp - hidden_dim)))           # (in1, Hp)
    w1z = w1[:latent_dim].astype(compute_dtype)            # (latent, Hp)
    w1y = w1[latent_dim:].astype(compute_dtype)            # (cond,   Hp)
    b1 = jnp.pad(fc1_b.astype(jnp.float32),
                 ((0, hp - hidden_dim),)).reshape(1, hp)    # (1, Hp) f32
    w2 = jnp.pad(fc2_w.T.astype(jnp.float32),
                 ((0, hp - hidden_dim), (0, 0))).astype(compute_dtype)  # (Hp, out)
    b2 = fc2_b.astype(jnp.float32).reshape(1, output_dim)  # (1, out) f32
    return (w1z, w1y, b1, w2, b2)


def _pallas_decoder(z, y, w1z, w1y, b1, w2, b2, *, tb, single_buffer_weights):
    b_pad = z.shape[0]
    latent_dim, hp = w1z.shape
    cond_dim = w1y.shape[0]
    output_dim = w2.shape[1]
    grid = (b_pad // tb,)

    if single_buffer_weights:
        # Constant-index resident operands: one buffer is enough; avoids
        # doubling their VMEM footprint when hidden/output scale up.
        def resident(shape):
            return pl.BlockSpec(shape, lambda i: (0, 0),
                                pipeline_mode=pl.Buffered(1))
    else:
        def resident(shape):
            return pl.BlockSpec(shape, lambda i: (0, 0))

    return pl.pallas_call(
        _decoder_kernel,
        out_shape=jax.ShapeDtypeStruct((b_pad, output_dim), jnp.float32),
        grid=grid,
        in_specs=[
            pl.BlockSpec((tb, latent_dim), lambda i: (i, 0)),  # z: streamed
            pl.BlockSpec((tb, cond_dim), lambda i: (i, 0)),    # y: streamed
            resident((latent_dim, hp)),                        # W1 (z half)
            resident((cond_dim, hp)),                          # W1 (y half)
            resident((1, hp)),                                 # b1
            resident((hp, output_dim)),                        # W2
            resident((1, output_dim)),                         # b2
        ],
        # Unpadded output columns: last block dim equals full array dim (legal)
        # -> no inflated writeback, no post-kernel column slice.
        out_specs=pl.BlockSpec((tb, output_dim), lambda i: (i, 0)),
        compiler_params=pltpu.CompilerParams(
            dimension_semantics=("parallel",),   # v7x: shard batch over 2 TCs
        ),
    )(z, y, w1z, w1y, b1, w2, b2)


def decoder_forward_prepared(z, y, params, *, use_pallas=None,
                             max_batch_tile=1024):
    """CVAE Decoder forward using pre-processed params (see prepare_decoder_params)."""
    w1z, w1y, b1, w2, b2 = params
    batch = z.shape[0]
    latent_dim = w1z.shape[0]
    cond_dim = w1y.shape[0]
    output_dim = w2.shape[1]
    assert z.shape[1] == latent_dim and y.shape[1] == cond_dim

    compute_dtype = w1z.dtype
    z = z.astype(compute_dtype)
    y = y.astype(compute_dtype)

    if use_pallas is None:
        # Tiny batches: the problem is a few KB; a fused XLA dot+tanh+dot beats
        # pad + pallas_call launch overhead on every TPU generation.
        use_pallas = batch > 128

    if not use_pallas:
        h = jnp.tanh(
            jnp.dot(z, w1z, preferred_element_type=jnp.float32)
            + jnp.dot(y, w1y, preferred_element_type=jnp.float32)
            + b1)
        out = (jnp.dot(h.astype(compute_dtype), w2,
                       preferred_element_type=jnp.float32) + b2)
        return out.astype(jnp.float32)

    # Batch tiling: big tiles to amortize ~0.35 us/grid-step overhead, but keep
    # >= 2 grid steps whenever batch > 16 so both v7x TensorCores are used.
    if batch <= 16:
        tb = _round_up(batch, 8)
    else:
        tb = min(max_batch_tile, _round_up(pl.cdiv(batch, 2), 8))
    b_pad = _round_up(batch, tb)

    if b_pad != batch:
        z = jnp.pad(z, ((0, b_pad - batch), (0, 0)))
        y = jnp.pad(y, ((0, b_pad - batch), (0, 0)))

    try:
        out = _pallas_decoder(z, y, w1z, w1y, b1, w2, b2, tb=tb,
                              single_buffer_weights=True)
    except Exception:
        # Fallback for jax versions without BlockSpec pipeline_mode support:
        # identical semantics, default double-buffered resident weights.
        out = _pallas_decoder(z, y, w1z, w1y, b1, w2, b2, tb=tb,
                              single_buffer_weights=False)

    return out[:batch] if b_pad != batch else out


def decoder_forward(z, y, fc1_w, fc1_b, fc2_w, fc2_b, *,
                    compute_dtype=jnp.float32, use_pallas=None):
    """Convenience wrapper matching the PyTorch module's parameterization.

    Prefer calling prepare_decoder_params once and reusing the result
    (decoder_forward_prepared) in an inference loop.
    """
    params = prepare_decoder_params(fc1_w, fc1_b, fc2_w, fc2_b,
                                    latent_dim=z.shape[1],
                                    compute_dtype=compute_dtype)
    return decoder_forward_prepared(z, y, params, use_pallas=use_pallas)


def reference_forward(z, y, fc1_w, fc1_b, fc2_w, fc2_b):
    """Plain-JAX reference matching the PyTorch module."""
    cat = jnp.concatenate([z, y], axis=1)
    hidden = jnp.tanh(cat @ fc1_w.T + fc1_b)
    return hidden @ fc2_w.T + fc2_b


def _run_case(key, batch, latent_dim, condition_dim, hidden_dim, output_dim,
              *, compute_dtype=jnp.float32, use_pallas=None,
              atol=1e-5, rtol=1e-5):
    kz, ky, kw1, kb1, kw2, kb2 = jax.random.split(key, 6)

    z = jax.random.normal(kz, (batch, latent_dim), dtype=jnp.float32)
    y = jax.random.normal(ky, (batch, condition_dim), dtype=jnp.float32)

    in1 = latent_dim + condition_dim
    # PyTorch nn.Linear layouts: weight (out, in), bias (out,)
    fc1_w = jax.random.normal(kw1, (hidden_dim, in1), dtype=jnp.float32) * 0.1
    fc1_b = jax.random.normal(kb1, (hidden_dim,), dtype=jnp.float32) * 0.1
    fc2_w = jax.random.normal(kw2, (output_dim, hidden_dim),
                              dtype=jnp.float32) * 0.1
    fc2_b = jax.random.normal(kb2, (output_dim,), dtype=jnp.float32) * 0.1

    # One-time weight preprocessing (hoisted out of the forward path).
    params = prepare_decoder_params(fc1_w, fc1_b, fc2_w, fc2_b,
                                    latent_dim=latent_dim,
                                    compute_dtype=compute_dtype)
    out = decoder_forward_prepared(z, y, params, use_pallas=use_pallas)
    out = jax.block_until_ready(out)

    ref = reference_forward(z, y, fc1_w, fc1_b, fc2_w, fc2_b)
    assert out.shape == (batch, output_dim), (out.shape, (batch, output_dim))
    max_err = float(jnp.max(jnp.abs(out - ref)))
    assert jnp.allclose(out, ref, atol=atol, rtol=rtol), (
        f"mismatch vs reference (max abs err {max_err:.3e})")


if __name__ == "__main__":
    key = jax.random.PRNGKey(0)
    k1, k2, k3 = jax.random.split(key, 3)

    # 1) Small, tile-aligned CVAE-decoder shapes; force the Pallas path.
    _run_case(k1, batch=8, latent_dim=8, condition_dim=8,
              hidden_dim=32, output_dim=16, use_pallas=True)

    # 2) Non-tile-aligned dims: exercises batch padding + unpadded feature
    #    dims with no in-kernel slicing (layout-safe for any latent_dim).
    _run_case(k2, batch=6, latent_dim=5, condition_dim=3,
              hidden_dim=20, output_dim=10, use_pallas=True)

    # 3) Larger batch: auto Pallas path, >= 2 grid steps (v7x megacore), f32.
    _run_case(k3, batch=512, latent_dim=8, condition_dim=8,
              hidden_dim=32, output_dim=16)

    # 4) bf16 streaming (v6e/v7x option): bf16 operands, f32 MXU accumulation,
    #    f32 bias/tanh/output; looser tolerance due to bf16 quantization.
    _run_case(k3, batch=512, latent_dim=8, condition_dim=8,
              hidden_dim=32, output_dim=16,
              compute_dtype=jnp.bfloat16, atol=5e-2, rtol=5e-2)

    print("KERNEL_OK")
</pallas_src>

<mosaic_0001>
module attributes {stable_mosaic.version = 11 : i64} {
  func.func @_decoder_kernel(%arg0: i32, %arg1: memref<8x8xf32, #tpu.memory_space<vmem>>, %arg2: memref<8x8xf32, #tpu.memory_space<vmem>>, %arg3: memref<8x128xf32, #tpu.memory_space<vmem>>, %arg4: memref<8x128xf32, #tpu.memory_space<vmem>>, %arg5: memref<1x128xf32, #tpu.memory_space<vmem>>, %arg6: memref<128x16xf32, #tpu.memory_space<vmem>>, %arg7: memref<1x16xf32, #tpu.memory_space<vmem>>, %arg8: memref<8x16xf32, #tpu.memory_space<vmem>>) attributes {dimension_semantics = [#tpu.dimension_semantics<parallel>], iteration_bounds = array<i64: 1>, scalar_prefetch = 0 : i64, scratch_operands = 0 : i64, tpu.core_type = #tpu.core_type<tc>, window_params = [{transform_indices = @transform_0, window_bounds = array<i64: 8, 8>}, {transform_indices = @transform_1, window_bounds = array<i64: 8, 8>}, {pipeline_mode = #tpu.pipeline_mode<synchronous>, transform_indices = @transform_2, window_bounds = array<i64: 8, 128>}, {pipeline_mode = #tpu.pipeline_mode<synchronous>, transform_indices = @transform_3, window_bounds = array<i64: 8, 128>}, {pipeline_mode = #tpu.pipeline_mode<synchronous>, transform_indices = @transform_4, window_bounds = array<i64: 1, 128>}, {pipeline_mode = #tpu.pipeline_mode<synchronous>, transform_indices = @transform_5, window_bounds = array<i64: 128, 16>}, {pipeline_mode = #tpu.pipeline_mode<synchronous>, transform_indices = @transform_6, window_bounds = array<i64: 1, 16>}, {transform_indices = @transform_7, window_bounds = array<i64: 8, 16>}]} {
    %c0 = arith.constant 0 : index
    %c0_0 = arith.constant 0 : index
    %0 = vector.load %arg1[%c0, %c0_0] : memref<8x8xf32, #tpu.memory_space<vmem>>, vector<8x8xf32>
    %c0_1 = arith.constant 0 : index
    %c0_2 = arith.constant 0 : index
    %1 = vector.load %arg3[%c0_1, %c0_2] : memref<8x128xf32, #tpu.memory_space<vmem>>, vector<8x128xf32>
    %cst = arith.constant dense<0.000000e+00> : vector<8x128xf32>
    %2 = tpu.matmul %0, %1, %cst {dimension_numbers = #tpu.dot_dimension_numbers<[1], [0], [0], [1], [0, 0, 1, 1], [], []>} : vector<8x8xf32>, vector<8x128xf32>, vector<8x128xf32> -> vector<8x128xf32>
    %c0_3 = arith.constant 0 : index
    %c0_4 = arith.constant 0 : index
    %3 = vector.load %arg2[%c0_3, %c0_4] : memref<8x8xf32, #tpu.memory_space<vmem>>, vector<8x8xf32>
    %c0_5 = arith.constant 0 : index
    %c0_6 = arith.constant 0 : index
    %4 = vector.load %arg4[%c0_5, %c0_6] : memref<8x128xf32, #tpu.memory_space<vmem>>, vector<8x128xf32>
    %cst_7 = arith.constant dense<0.000000e+00> : vector<8x128xf32>
    %5 = tpu.matmul %3, %4, %cst_7 {dimension_numbers = #tpu.dot_dimension_numbers<[1], [0], [0], [1], [0, 0, 1, 1], [], []>} : vector<8x8xf32>, vector<8x128xf32>, vector<8x128xf32> -> vector<8x128xf32>
    %6 = arith.addf %2, %5 : vector<8x128xf32>
    %c0_8 = arith.constant 0 : index
    %c0_9 = arith.constant 0 : index
    %7 = vector.load %arg5[%c0_8, %c0_9] : memref<1x128xf32, #tpu.memory_space<vmem>>, vector<1x128xf32>
    %8 = vector.broadcast %7 : vector<1x128xf32> to vector<8x128xf32>
    %9 = arith.addf %6, %8 : vector<8x128xf32>
    %10 = math.tanh %9 : vector<8x128xf32>
    %c0_10 = arith.constant 0 : index
    %c0_11 = arith.constant 0 : index
    %11 = vector.load %arg6[%c0_10, %c0_11] : memref<128x16xf32, #tpu.memory_space<vmem>>, vector<128x16xf32>
    %cst_12 = arith.constant dense<0.000000e+00> : vector<8x16xf32>
    %12 = tpu.matmul %10, %11, %cst_12 {dimension_numbers = #tpu.dot_dimension_numbers<[1], [0], [0], [1], [0, 0, 1, 1], [], []>} : vector<8x128xf32>, vector<128x16xf32>, vector<8x16xf32> -> vector<8x16xf32>
    %c0_13 = arith.constant 0 : index
    %c0_14 = arith.constant 0 : index
    %13 = vector.load %arg7[%c0_13, %c0_14] : memref<1x16xf32, #tpu.memory_space<vmem>>, vector<1x16xf32>
    %14 = vector.broadcast %13 : vector<1x16xf32> to vector<8x16xf32>
    %15 = arith.addf %12, %14 : vector<8x16xf32>
    %c0_15 = arith.constant 0 : index
    %c0_16 = arith.constant 0 : index
    %16 = vector.load %arg8[%c0_15, %c0_16] : memref<8x16xf32, #tpu.memory_space<vmem>>, vector<8x16xf32>
    tpu.vector_store %arg8[%c0_15, %c0_16], %15 {strides = array<i32>} : memref<8x16xf32, #tpu.memory_space<vmem>>, vector<8x16xf32>,
    return
  }
  func.func @transform_0(%arg0: i32) -> (i32, i32) {
    %c0_i32 = arith.constant 0 : i32
    %c0_i32_0 = arith.constant 0 : i32
    return %arg0, %c0_i32 : i32, i32
  }
  func.func @transform_1(%arg0: i32) -> (i32, i32) {
    %c0_i32 = arith.constant 0 : i32
    %c0_i32_0 = arith.constant 0 : i32
    return %arg0, %c0_i32 : i32, i32
  }
  func.func @transform_2(%arg0: i32) -> (i32, i32) {
    %c0_i32 = arith.constant 0 : i32
    %c0_i32_0 = arith.constant 0 : i32
    %c0_i32_1 = arith.constant 0 : i32
    return %c0_i32, %c0_i32_0 : i32, i32
  }
  func.func @transform_3(%arg0: i32) -> (i32, i32) {
    %c0_i32 = arith.constant 0 : i32
    %c0_i32_0 = arith.constant 0 : i32
    %c0_i32_1 = arith.constant 0 : i32
    return %c0_i32, %c0_i32_0 : i32, i32
  }
  func.func @transform_4(%arg0: i32) -> (i32, i32) {
    %c0_i32 = arith.constant 0 : i32
    %c0_i32_0 = arith.constant 0 : i32
    %c0_i32_1 = arith.constant 0 : i32
    return %c0_i32, %c0_i32_0 : i32, i32
  }
  func.func @transform_5(%arg0: i32) -> (i32, i32) {
    %c0_i32 = arith.constant 0 : i32
    %c0_i32_0 = arith.constant 0 : i32
    %c0_i32_1 = arith.constant 0 : i32
    return %c0_i32, %c0_i32_0 : i32, i32
  }
  func.func @transform_6(%arg0: i32) -> (i32, i32) {
    %c0_i32 = arith.constant 0 : i32
    %c0_i32_0 = arith.constant 0 : i32
    %c0_i32_1 = arith.constant 0 : i32
    return %c0_i32, %c0_i32_0 : i32, i32
  }
  func.func @transform_7(%arg0: i32) -> (i32, i32) {
    %c0_i32 = arith.constant 0 : i32
    %c0_i32_0 = arith.constant 0 : i32
    return %arg0, %c0_i32 : i32, i32
  }
}

module attributes {stable_mosaic.version = 11 : i64} {
  func.func @_decoder_kernel(%arg0: i32, %arg1: memref<8x8xf32, #tpu.memory_space<vmem>>, %arg2: memref<8x8xf32, #tpu.memory_space<vmem>>, %arg3: memref<8x128xf32, #tpu.memory_space<vmem>>, %arg4: memref<8x128xf32, #tpu.memory_space<vmem>>, %arg5: memref<1x128xf32, #tpu.memory_space<vmem>>, %arg6: memref<128x16xf32, #tpu.memory_space<vmem>>, %arg7: memref<1x16xf32, #tpu.memory_space<vmem>>, %arg8: memref<8x16xf32, #tpu.memory_space<vmem>>) attributes {dimension_semantics = [#tpu.dimension_semantics<parallel>], iteration_bounds = array<i64: 1>, scalar_prefetch = 0 : i64, scratch_operands = 0 : i64, tpu.core_type = #tpu.core_type<tc>, window_params = [{transform_indices = @transform_0, window_bounds = array<i64: 8, 8>}, {transform_indices = @transform_1, window_bounds = array<i64: 8, 8>}, {pipeline_mode = #tpu.pipeline_mode<synchronous>, transform_indices = @transform_2, window_bounds = array<i64: 8, 128>}, {pipeline_mode = #tpu.pipeline_mode<synchronous>, transform_indices = @transform_3, window_bounds = array<i64: 8, 128>}, {pipeline_mode = #tpu.pipeline_mode<synchronous>, transform_indices = @transform_4, window_bounds = array<i64: 1, 128>}, {pipeline_mode = #tpu.pipeline_mode<synchronous>, transform_indices = @transform_5, window_bounds = array<i64: 128, 16>}, {pipeline_mode = #tpu.pipeline_mode<synchronous>, transform_indices = @transform_6, window_bounds = array<i64: 1, 16>}, {transform_indices = @transform_7, window_bounds = array<i64: 8, 16>}]} {
    %c0 = arith.constant 0 : index
    %c0_0 = arith.constant 0 : index
    %0 = vector.load %arg1[%c0, %c0_0] : memref<8x8xf32, #tpu.memory_space<vmem>>, vector<8x8xf32>
    %c0_1 = arith.constant 0 : index
    %c0_2 = arith.constant 0 : index
    %1 = vector.load %arg3[%c0_1, %c0_2] : memref<8x128xf32, #tpu.memory_space<vmem>>, vector<8x128xf32>
    %cst = arith.constant dense<0.000000e+00> : vector<8x128xf32>
    %2 = tpu.matmul %0, %1, %cst {dimension_numbers = #tpu.dot_dimension_numbers<[1], [0], [0], [1], [0, 0, 1, 1], [], []>} : vector<8x8xf32>, vector<8x128xf32>, vector<8x128xf32> -> vector<8x128xf32>
    %c0_3 = arith.constant 0 : index
    %c0_4 = arith.constant 0 : index
    %3 = vector.load %arg2[%c0_3, %c0_4] : memref<8x8xf32, #tpu.memory_space<vmem>>, vector<8x8xf32>
    %c0_5 = arith.constant 0 : index
    %c0_6 = arith.constant 0 : index
    %4 = vector.load %arg4[%c0_5, %c0_6] : memref<8x128xf32, #tpu.memory_space<vmem>>, vector<8x128xf32>
    %cst_7 = arith.constant dense<0.000000e+00> : vector<8x128xf32>
    %5 = tpu.matmul %3, %4, %cst_7 {dimension_numbers = #tpu.dot_dimension_numbers<[1], [0], [0], [1], [0, 0, 1, 1], [], []>} : vector<8x8xf32>, vector<8x128xf32>, vector<8x128xf32> -> vector<8x128xf32>
    %6 = arith.addf %2, %5 : vector<8x128xf32>
    %c0_8 = arith.constant 0 : index
    %c0_9 = arith.constant 0 : index
    %7 = vector.load %arg5[%c0_8, %c0_9] : memref<1x128xf32, #tpu.memory_space<vmem>>, vector<1x128xf32>
    %8 = vector.broadcast %7 : vector<1x128xf32> to vector<8x128xf32>
    %9 = arith.addf %6, %8 : vector<8x128xf32>
    %10 = math.tanh %9 : vector<8x128xf32>
    %c0_10 = arith.constant 0 : index
    %c0_11 = arith.constant 0 : index
    %11 = vector.load %arg6[%c0_10, %c0_11] : memref<128x16xf32, #tpu.memory_space<vmem>>, vector<128x16xf32>
    %cst_12 = arith.constant dense<0.000000e+00> : vector<8x16xf32>
    %12 = tpu.matmul %10, %11, %cst_12 {dimension_numbers = #tpu.dot_dimension_numbers<[1], [0], [0], [1], [0, 0, 1, 1], [], []>} : vector<8x128xf32>, vector<128x16xf32>, vector<8x16xf32> -> vector<8x16xf32>
    %c0_13 = arith.constant 0 : index
    %c0_14 = arith.constant 0 : index
    %13 = vector.load %arg7[%c0_13, %c0_14] : memref<1x16xf32, #tpu.memory_space<vmem>>, vector<1x16xf32>
    %14 = vector.broadcast %13 : vector<1x16xf32> to vector<8x16xf32>
    %15 = arith.addf %12, %14 : vector<8x16xf32>
    %c0_15 = arith.constant 0 : index
    %c0_16 = arith.constant 0 : index
    %16 = vector.load %arg8[%c0_15, %c0_16] : memref<8x16xf32, #tpu.memory_space<vmem>>, vector<8x16xf32>
    tpu.vector_store %arg8[%c0_15, %c0_16], %15 {strides = array<i32>} : memref<8x16xf32, #tpu.memory_space<vmem>>, vector<8x16xf32>,
    return
  }
  func.func @transform_0(%arg0: i32) -> (i32, i32) {
    %c0_i32 = arith.constant 0 : i32
    %c0_i32_0 = arith.constant 0 : i32
    return %arg0, %c0_i32 : i32, i32
  }
  func.func @transform_1(%arg0: i32) -> (i32, i32) {
    %c0_i32 = arith.constant 0 : i32
    %c0_i32_0 = arith.constant 0 : i32
    return %arg0, %c0_i32 : i32, i32
  }
  func.func @transform_2(%arg0: i32) -> (i32, i32) {
    %c0_i32 = arith.constant 0 : i32
    %c0_i32_0 = arith.constant 0 : i32
    %c0_i32_1 = arith.constant 0 : i32
    return %c0_i32, %c0_i32_0 : i32, i32
  }
  func.func @transform_3(%arg0: i32) -> (i32, i32) {
    %c0_i32 = arith.constant 0 : i32
    %c0_i32_0 = arith.constant 0 : i32
    %c0_i32_1 = arith.constant 0 : i32
    return %c0_i32, %c0_i32_0 : i32, i32
  }
  func.func @transform_4(%arg0: i32) -> (i32, i32) {
    %c0_i32 = arith.constant 0 : i32
    %c0_i32_0 = arith.constant 0 : i32
    %c0_i32_1 = arith.constant 0 : i32
    return %c0_i32, %c0_i32_0 : i32, i32
  }
  func.func @transform_5(%arg0: i32) -> (i32, i32) {
    %c0_i32 = arith.constant 0 : i32
    %c0_i32_0 = arith.constant 0 : i32
    %c0_i32_1 = arith.constant 0 : i32
    return %c0_i32, %c0_i32_0 : i32, i32
  }
  func.func @transform_6(%arg0: i32) -> (i32, i32) {
    %c0_i32 = arith.constant 0 : i32
    %c0_i32_0 = arith.constant 0 : i32
    %c0_i32_1 = arith.constant 0 : i32
    return %c0_i32, %c0_i32_0 : i32, i32
  }
  func.func @transform_7(%arg0: i32) -> (i32, i32) {
    %c0_i32 = arith.constant 0 : i32
    %c0_i32_0 = arith.constant 0 : i32
    return %arg0, %c0_i32 : i32, i32
  }
}

</mosaic_0001>

<llo_original>
// kernel: tpu_custom_call.1
$region0: #{tpu_custom_call.1}
  #allocation0 [shape = 'u32[]', space=smem, size = 0x4, offset = 0x4, fixed_abs, tag = 'smem constant byte address 0x4 - core index']
  #allocation1 [shape = 'u32[144,128]{1,0:T(1,128)}', space=vmem, size = 0x12000, scoped, tag = 'internal scratch']
  %s0 = inlined_call_operand.vmem [shape: f32[8,8], index: 0, kind: input, shape index: {}]
  %s1 = inlined_call_operand.vmem [shape: f32[8,8], index: 1, kind: input, shape index: {}]
  %s2 = inlined_call_operand.vmem [shape: f32[8,128], index: 2, kind: input, shape index: {}]
  %s3 = inlined_call_operand.vmem [shape: f32[8,128], index: 3, kind: input, shape index: {}]
  %s4 = inlined_call_operand.vmem [shape: f32[1,128], index: 4, kind: input, shape index: {}]
  %s5 = inlined_call_operand.vmem [shape: f32[128,16], index: 5, kind: input, shape index: {}]
  %s6 = inlined_call_operand.vmem [shape: f32[1,16], index: 6, kind: input, shape index: {}]
  %s7 = inlined_call_operand.hbm [shape: f32[8,16], index: 7, kind: output, shape index: {}]
  %s8 = sld [smem:[#allocation0]]
  $region38: #{tpu_custom_call.1} parent=0
    _
  %s10 = ssub.s32 1, %s8
  %s11 = scalar_select 0, %s10, %s8
  $region1: #{tpu_custom_call.1} parent=0
    #allocation2 [shape = 'u8[4096]{0}', space=vmem, size = 0x1000, scoped, tag = 'output window, operand 0, single buffered']
    #allocation3 [shape = 's32[1]{0}', space=sflag, size = 0x4, scoped, tag = 'scoped memory for tpu_custom_call.1']
    %12 = vsyncpa [#allocation3], 0
    // Predicated region
    $region2: #{tpu_custom_call.1} parent=1 // pred_check
      _
    $region3: #{tpu_custom_call.1} parent=1 // pred_check_branch
      %14 = sbr.rel (0) target = $region5
    $region4: #{tpu_custom_call.1} parent=1 // pred_region
      _
    $region5: #{tpu_custom_call.1} parent=1 // pred_fallthru
      _
    // Predicated region
    $region6: #{tpu_custom_call.1} parent=1 // pred_check
      _
    $region7: #{tpu_custom_call.1} parent=1 // pred_check_branch
      %16 = sbr.rel (0) target = $region9
    $region8: #{tpu_custom_call.1} parent=1 // pred_region
      _
    $region9: #{tpu_custom_call.1} parent=1 // pred_fallthru
      _
    // Predicated region
    $region10: #{tpu_custom_call.1} parent=1 // pred_check
      _
    $region11: #{tpu_custom_call.1} parent=1 // pred_check_branch
      %18 = sbr.rel (0) target = $region13
    $region12: #{tpu_custom_call.1} parent=1 // pred_region
      _
    $region13: #{tpu_custom_call.1} parent=1 // pred_fallthru
      _
    // Predicated region
    $region14: #{tpu_custom_call.1} parent=1 // pred_check
      _
    $region15: #{tpu_custom_call.1} parent=1 // pred_check_branch
      %20 = sbr.rel (0) target = $region17
    $region16: #{tpu_custom_call.1} parent=1 // pred_region
      _
    $region17: #{tpu_custom_call.1} parent=1 // pred_fallthru
      _
    // Predicated region
    $region18: #{tpu_custom_call.1} parent=1 // pred_check
      _
    $region19: #{tpu_custom_call.1} parent=1 // pred_check_branch
      %22 = sbr.rel (0) target = $region21
    $region20: #{tpu_custom_call.1} parent=1 // pred_region
      _
    $region21: #{tpu_custom_call.1} parent=1 // pred_fallthru
      _
    // Predicated region
    $region22: #{tpu_custom_call.1} parent=1 // pred_check
      _
    $region23: #{tpu_custom_call.1} parent=1 // pred_check_branch
      %24 = sbr.rel (0) target = $region25
    $region24: #{tpu_custom_call.1} parent=1 // pred_region
      _
    $region25: #{tpu_custom_call.1} parent=1 // pred_fallthru
      _
    // Predicated region
    $region26: #{tpu_custom_call.1} parent=1 // pred_check
      _
    $region27: #{tpu_custom_call.1} parent=1 // pred_check_branch
      %26 = sbr.rel (0) target = $region29
    $region28: #{tpu_custom_call.1} parent=1 // pred_region
      _
    $region29: #{tpu_custom_call.1} parent=1 // pred_fallthru
      _
    %v27 = vld [vmem:[%s0] sm:$0xff]
    %v28 = vld [vmem:[%s2] sm:$0xff]
    %v29 = vld [vmem:[%s1] sm:$0xff]
    %v30 = vld [vmem:[%s3] sm:$0xff]
    %vm31 = vcmask 64512
    %v33 = vsel %vm31, %v29, 0
    %35 = vmatprep.subr.mxu0 0.0
    %36 = vmatpush1.msra.mxu0 %v30
    %37 = vmatprep.subr.mxu0 0.0
    %38 = vmatpush1.msra.mxu0 0.0
    %39 = vmatprep.subr.mxu0 0.0
    %40 = vmatpush1.msra.mxu0 0.0
    %41 = vmatprep.subr.mxu0 0.0
    %42 = vmatpush1.msra.mxu0 0.0
    %43 = vmatprep.subr.mxu0 0.0
    %44 = vmatpush1.msra.mxu0 0.0
    %45 = vmatprep.subr.mxu0 0.0
    %46 = vmatpush1.msra.mxu0 0.0
    %47 = vmatprep.subr.mxu0 0.0
    %48 = vmatpush1.msra.mxu0 0.0
    %49 = vmatprep.subr.mxu0 0.0
    %50 = vmatpush1.msra.mxu0 0.0
    %51 = vmatprep.subr.mxu0 0.0
    %52 = vmatpush1.msra.mxu0 0.0
    %53 = vmatprep.subr.mxu0 0.0
    %54 = vmatpush1.msra.mxu0 0.0
    %55 = vmatprep.subr.mxu0 0.0
    %56 = vmatpush1.msra.mxu0 0.0
    %57 = vmatprep.subr.mxu0 0.0
    %58 = vmatpush1.msra.mxu0 0.0
    %59 = vmatprep.subr.mxu0 0.0
    %60 = vmatpush1.msra.mxu0 0.0
    %61 = vmatprep.subr.mxu0 0.0
    %62 = vmatpush1.msra.mxu0 0.0
    %63 = vmatprep.subr.mxu0 0.0
    %64 = vmatpush1.msra.mxu0 0.0
    %65 = vmatprep.subr.mxu0 0.0
    %66 = vmatpush1.msra.mxu0 0.0
    %67 = vmatprep.subr.mxu0 0.0
    %68 = vmatpush1.msra.mxu0 0.0
    %69 = vmatprep.subr.mxu0 0.0
    %70 = vmatpush1.msra.mxu0 0.0
    %71 = vmatprep.subr.mxu0 0.0
    %72 = vmatpush1.msra.mxu0 0.0
    %73 = vmatprep.subr.mxu0 0.0
    %74 = vmatpush1.msra.mxu0 0.0
    %75 = vmatprep.subr.mxu0 0.0
    %76 = vmatpush1.msra.mxu0 0.0
    %77 = vmatprep.subr.mxu0 0.0
    %78 = vmatpush1.msra.mxu0 0.0
    %79 = vmatprep.subr.mxu0 0.0
    %80 = vmatpush1.msra.mxu0 0.0
    %81 = vmatprep.subr.mxu0 0.0
    %82 = vmatpush1.msra.mxu0 0.0
    %83 = vmatprep.subr.mxu0 0.0
    %84 = vmatpush1.msra.mxu0 0.0
    %85 = vmatprep.subr.mxu0 0.0
    %86 = vmatpush1.msra.mxu0 0.0
    %87 = vmatprep.subr.mxu0 0.0
    %88 = vmatpush1.msra.mxu0 0.0
    %89 = vmatprep.subr.mxu0 0.0
    %90 = vmatpush1.msra.mxu0 0.0
    %91 = vmatprep.subr.mxu0 0.0
    %92 = vmatpush1.msra.mxu0 0.0
    %93 = vmatprep.subr.mxu0 0.0
    %94 = vmatpush1.msra.mxu0 0.0
    %95 = vmatprep.subr.mxu0 0.0
    %96 = vmatpush1.msra.mxu0 0.0
    %97 = vmatprep.subr.mxu0 0.0
    %98 = vmatpush1.msra.mxu0 0.0
    %99 = vmatprep.mubr.f32.mxu0 0.0
    %100 = vmatmul.mubr.f32.gmra.mrb[0].mxu0 %v33
    %v101 = vpop.f32.mrb[0].mxu0
    %v102 = vadd.f32 0.0, %v101
    %v103 = vpop.f32.mrb[0].mxu0
    %104 = vdwg.mxu0
    %v106 = vsel %vm31, %v27, 0
    %108 = vmatprep.subr.mxu0 0.0
    %109 = vmatpush1.msra.mxu0 %v28
    %110 = vmatprep.subr.mxu0 0.0
    %111 = vmatpush1.msra.mxu0 0.0
    %112 = vmatprep.subr.mxu0 0.0
    %113 = vmatpush1.msra.mxu0 0.0
    %114 = vmatprep.subr.mxu0 0.0
    %115 = vmatpush1.msra.mxu0 0.0
    %116 = vmatprep.subr.mxu0 0.0
    %117 = vmatpush1.msra.mxu0 0.0
    %118 = vmatprep.subr.mxu0 0.0
    %119 = vmatpush1.msra.mxu0 0.0
    %120 = vmatprep.subr.mxu0 0.0
    %121 = vmatpush1.msra.mxu0 0.0
    %122 = vmatprep.subr.mxu0 0.0
    %123 = vmatpush1.msra.mxu0 0.0
    %124 = vmatprep.subr.mxu0 0.0
    %125 = vmatpush1.msra.mxu0 0.0
    %126 = vmatprep.subr.mxu0 0.0
    %127 = vmatpush1.msra.mxu0 0.0
    %128 = vmatprep.subr.mxu0 0.0
    %129 = vmatpush1.msra.mxu0 0.0
    %130 = vmatprep.subr.mxu0 0.0
    %131 = vmatpush1.msra.mxu0 0.0
    %132 = vmatprep.subr.mxu0 0.0
    %133 = vmatpush1.msra.mxu0 0.0
    %134 = vmatprep.subr.mxu0 0.0
    %135 = vmatpush1.msra.mxu0 0.0
    %136 = vmatprep.subr.mxu0 0.0
    %137 = vmatpush1.msra.mxu0 0.0
    %138 = vmatprep.subr.mxu0 0.0
    %139 = vmatpush1.msra.mxu0 0.0
    %140 = vmatprep.subr.mxu0 0.0
    %141 = vmatpush1.msra.mxu0 0.0
    %142 = vmatprep.subr.mxu0 0.0
    %143 = vmatpush1.msra.mxu0 0.0
    %144 = vmatprep.subr.mxu0 0.0
    %145 = vmatpush1.msra.mxu0 0.0
    %146 = vmatprep.subr.mxu0 0.0
    %147 = vmatpush1.msra.mxu0 0.0
    %148 = vmatprep.subr.mxu0 0.0
    %149 = vmatpush1.msra.mxu0 0.0
    %150 = vmatprep.subr.mxu0 0.0
    %151 = vmatpush1.msra.mxu0 0.0
    %152 = vmatprep.subr.mxu0 0.0
    %153 = vmatpush1.msra.mxu0 0.0
    %154 = vmatprep.subr.mxu0 0.0
    %155 = vmatpush1.msra.mxu0 0.0
    %156 = vmatprep.subr.mxu0 0.0
    %157 = vmatpush1.msra.mxu0 0.0
    %158 = vmatprep.subr.mxu0 0.0
    %159 = vmatpush1.msra.mxu0 0.0
    %160 = vmatprep.subr.mxu0 0.0
    %161 = vmatpush1.msra.mxu0 0.0
    %162 = vmatprep.subr.mxu0 0.0
    %163 = vmatpush1.msra.mxu0 0.0
    %164 = vmatprep.subr.mxu0 0.0
    %165 = vmatpush1.msra.mxu0 0.0
    %166 = vmatprep.subr.mxu0 0.0
    %167 = vmatpush1.msra.mxu0 0.0
    %168 = vmatprep.subr.mxu0 0.0
    %169 = vmatpush1.msra.mxu0 0.0
    %170 = vmatprep.subr.mxu0 0.0
    %171 = vmatpush1.msra.mxu0 0.0
    %172 = vmatprep.mubr.f32.mxu0 0.0
    %173 = vmatmul.mubr.f32.gmra.mrb[0].mxu0 %v106
    %v174 = vpop.f32.mrb[0].mxu0
    %v175 = vadd.f32 %v102, %v174
    %v176 = vpop.f32.mrb[0].mxu0
    %177 = vdwg.mxu0
    %v178 = vld [vmem:[%s4] sm:$0x1]
    %v180 = vlaneseq
    %v181 = vshrl.u32 %v180, 7
    %v182 = vsub.s32 0, %v181
    %v183 = vrot.slane %v178, %v182
    %v185 = vadd.f32 %v175, %v183
    %v186 = vtanh.pop %v185
    %v187 = vld [vmem:[%s5] sm:$0xff]
    %v188 = vld [vmem:[%s5 + $0x8] sm:$0xff]
    %v189 = vld [vmem:[%s5 + $0x10] sm:$0xff]
    %v190 = vld [vmem:[%s5 + $0x18] sm:$0xff]
    %v191 = vld [vmem:[%s5 + $0x20] sm:$0xff]
    %v192 = vld [vmem:[%s5 + $0x28] sm:$0xff]
    %v193 = vld [vmem:[%s5 + $0x30] sm:$0xff]
    %v194 = vld [vmem:[%s5 + $0x38] sm:$0xff]
    %v195 = vld [vmem:[%s5 + $0x40] sm:$0xff]
    %v196 = vld [vmem:[%s5 + $0x48] sm:$0xff]
    %v197 = vld [vmem:[%s5 + $0x50] sm:$0xff]
    %v198 = vld [vmem:[%s5 + $0x58] sm:$0xff]
    %v199 = vld [vmem:[%s5 + $0x60] sm:$0xff]
    %v200 = vld [vmem:[%s5 + $0x68] sm:$0xff]
    %v201 = vld [vmem:[%s5 + $0x70] sm:$0xff]
    %v202 = vld [vmem:[%s5 + $0x78] sm:$0xff]
    %v203 = vld [vmem:[%s6] sm:$0x1]
    %v205 = vlaneseq
    %v206 = vshrl.u32 %v205, 7
    %v207 = vsub.s32 0, %v206
    %v208 = vrot.slane %v203, %v207
    %210 = vmatprep.subr.mxu0 0.0
    %211 = vmatpush1.msra.mxu0 %v187
    %212 = vmatprep.subr.mxu0 0.0
    %213 = vmatpush1.msra.mxu0 %v188
    %214 = vmatprep.subr.mxu0 0.0
    %215 = vmatpush1.msra.mxu0 %v189
    %216 = vmatprep.subr.mxu0 0.0
    %217 = vmatpush1.msra.mxu0 %v190
    %218 = vmatprep.subr.mxu0 0.0
    %219 = vmatpush1.msra.mxu0 %v191
    %220 = vmatprep.subr.mxu0 0.0
    %221 = vmatpush1.msra.mxu0 %v192
    %222 = vmatprep.subr.mxu0 0.0
    %223 = vmatpush1.msra.mxu0 %v193
    %224 = vmatprep.subr.mxu0 0.0
    %225 = vmatpush1.msra.mxu0 %v194
    %226 = vmatprep.subr.mxu0 0.0
    %227 = vmatpush1.msra.mxu0 %v195
    %228 = vmatprep.subr.mxu0 0.0
    %229 = vmatpush1.msra.mxu0 %v196
    %230 = vmatprep.subr.mxu0 0.0
    %231 = vmatpush1.msra.mxu0 %v197
    %232 = vmatprep.subr.mxu0 0.0
    %233 = vmatpush1.msra.mxu0 %v198
    %234 = vmatprep.subr.mxu0 0.0
    %235 = vmatpush1.msra.mxu0 %v199
    %236 = vmatprep.subr.mxu0 0.0
    %237 = vmatpush1.msra.mxu0 %v200
    %238 = vmatprep.subr.mxu0 0.0
    %239 = vmatpush1.msra.mxu0 %v201
    %240 = vmatprep.subr.mxu0 0.0
    %241 = vmatpush1.msra.mxu0 %v202
    %242 = vmatprep.subr.mxu0 0.0
    %243 = vmatpush1.msra.mxu0 0.0
    %244 = vmatprep.subr.mxu0 0.0
    %245 = vmatpush1.msra.mxu0 0.0
    %246 = vmatprep.subr.mxu0 0.0
    %247 = vmatpush1.msra.mxu0 0.0
    %248 = vmatprep.subr.mxu0 0.0
    %249 = vmatpush1.msra.mxu0 0.0
    %250 = vmatprep.subr.mxu0 0.0
    %251 = vmatpush1.msra.mxu0 0.0
    %252 = vmatprep.subr.mxu0 0.0
    %253 = vmatpush1.msra.mxu0 0.0
    %254 = vmatprep.subr.mxu0 0.0
    %255 = vmatpush1.msra.mxu0 0.0
    %256 = vmatprep.subr.mxu0 0.0
    %257 = vmatpush1.msra.mxu0 0.0
    %258 = vmatprep.subr.mxu0 0.0
    %259 = vmatpush1.msra.mxu0 0.0
    %260 = vmatprep.subr.mxu0 0.0
    %261 = vmatpush1.msra.mxu0 0.0
    %262 = vmatprep.subr.mxu0 0.0
    %263 = vmatpush1.msra.mxu0 0.0
    %264 = vmatprep.subr.mxu0 0.0
    %265 = vmatpush1.msra.mxu0 0.0
    %266 = vmatprep.subr.mxu0 0.0
    %267 = vmatpush1.msra.mxu0 0.0
    %268 = vmatprep.subr.mxu0 0.0
    %269 = vmatpush1.msra.mxu0 0.0
    %270 = vmatprep.subr.mxu0 0.0
    %271 = vmatpush1.msra.mxu0 0.0
    %272 = vmatprep.subr.mxu0 0.0
    %273 = vmatpush1.msra.mxu0 0.0
    %274 = vmatprep.mubr.f32.mxu0 0.0
    %275 = vmatmul.mubr.f32.gmra.mrb[0].mxu0 %v186
    %v276 = vpop.f32.mrb[0].mxu0
    %v277 = vadd.f32 %v208, %v276
    %v278 = vpop.f32.mrb[0].mxu0
    %279 = vdwg.mxu0
    %vm280 = vcmask 130048
    %281 = vst.msk [vmem:[#allocation2] sm:$0xff] %vm280, %v277
    // Predicated region
    $region30: #{tpu_custom_call.1} parent=1 // pred_check
      _
    $region31: #{tpu_custom_call.1} parent=1 // pred_check_branch
      %283 = sbr.rel (0) target = $region33
    $region32: #{tpu_custom_call.1} parent=1 // pred_region
      %s285 = ssub.s32 128, 128
      %286 = vsyncadd [#allocation3], %s285
      %s288 = sshll.u32 [#allocation2], 4
      %s289 = int_to_ptr.vmem [resolvable:$true] %s288
      %291 = dma.vmem_to_hbm [thread:$0]  %s289, 128, %s7, [#allocation3]
    $region33: #{tpu_custom_call.1} parent=1 // pred_fallthru
      _
    // Predicated region
    $region34: #{tpu_custom_call.1} parent=1 // pred_check
      _
    $region35: #{tpu_custom_call.1} parent=1 // pred_check_branch
      %293 = sbr.rel (0) target = $region37
    $region36: #{tpu_custom_call.1} parent=1 // pred_region
      %294 = dma.done [#allocation3], 128
    $region37: #{tpu_custom_call.1} parent=1 // pred_fallthru
      _
    %295 = vsyncpa [#allocation3], 1

// kernel: tpu_custom_call.1
$region0: #{tpu_custom_call.1}
  #allocation0 [shape = 'u32[]', space=smem, size = 0x4, offset = 0x4, fixed_abs, tag = 'smem constant byte address 0x4 - core index']
  #allocation1 [shape = 'u32[144,128]{1,0:T(1,128)}', space=vmem, size = 0x12000, scoped, tag = 'internal scratch']
  %s0 = inlined_call_operand.vmem [shape: f32[8,8], index: 0, kind: input, shape index: {}]
  %s1 = inlined_call_operand.vmem [shape: f32[8,8], index: 1, kind: input, shape index: {}]
  %s2 = inlined_call_operand.vmem [shape: f32[8,128], index: 2, kind: input, shape index: {}]
  %s3 = inlined_call_operand.vmem [shape: f32[8,128], index: 3, kind: input, shape index: {}]
  %s4 = inlined_call_operand.vmem [shape: f32[1,128], index: 4, kind: input, shape index: {}]
  %s5 = inlined_call_operand.vmem [shape: f32[128,16], index: 5, kind: input, shape index: {}]
  %s6 = inlined_call_operand.vmem [shape: f32[1,16], index: 6, kind: input, shape index: {}]
  %s7 = inlined_call_operand.hbm [shape: f32[8,16], index: 7, kind: output, shape index: {}]
  %s8 = sld [smem:[#allocation0]]
  $region38: #{tpu_custom_call.1} parent=0
    _
  %s10 = ssub.s32 1, %s8
  %s11 = scalar_select 0, %s10, %s8
  $region1: #{tpu_custom_call.1} parent=0
    #allocation2 [shape = 'u8[4096]{0}', space=vmem, size = 0x1000, scoped, tag = 'output window, operand 0, single buffered']
    #allocation3 [shape = 's32[1]{0}', space=sflag, size = 0x4, scoped, tag = 'scoped memory for tpu_custom_call.1']
    %12 = vsyncpa [#allocation3], 0
    // Predicated region
    $region2: #{tpu_custom_call.1} parent=1 // pred_check
      _
    $region3: #{tpu_custom_call.1} parent=1 // pred_check_branch
      %14 = sbr.rel (0) target = $region5
    $region4: #{tpu_custom_call.1} parent=1 // pred_region
      _
    $region5: #{tpu_custom_call.1} parent=1 // pred_fallthru
      _
    // Predicated region
    $region6: #{tpu_custom_call.1} parent=1 // pred_check
      _
    $region7: #{tpu_custom_call.1} parent=1 // pred_check_branch
      %16 = sbr.rel (0) target = $region9
    $region8: #{tpu_custom_call.1} parent=1 // pred_region
      _
    $region9: #{tpu_custom_call.1} parent=1 // pred_fallthru
      _
    // Predicated region
    $region10: #{tpu_custom_call.1} parent=1 // pred_check
      _
    $region11: #{tpu_custom_call.1} parent=1 // pred_check_branch
      %18 = sbr.rel (0) target = $region13
    $region12: #{tpu_custom_call.1} parent=1 // pred_region
      _
    $region13: #{tpu_custom_call.1} parent=1 // pred_fallthru
      _
    // Predicated region
    $region14: #{tpu_custom_call.1} parent=1 // pred_check
      _
    $region15: #{tpu_custom_call.1} parent=1 // pred_check_branch
      %20 = sbr.rel (0) target = $region17
    $region16: #{tpu_custom_call.1} parent=1 // pred_region
      _
    $region17: #{tpu_custom_call.1} parent=1 // pred_fallthru
      _
    // Predicated region
    $region18: #{tpu_custom_call.1} parent=1 // pred_check
      _
    $region19: #{tpu_custom_call.1} parent=1 // pred_check_branch
      %22 = sbr.rel (0) target = $region21
    $region20: #{tpu_custom_call.1} parent=1 // pred_region
      _
    $region21: #{tpu_custom_call.1} parent=1 // pred_fallthru
      _
    // Predicated region
    $region22: #{tpu_custom_call.1} parent=1 // pred_check
      _
    $region23: #{tpu_custom_call.1} parent=1 // pred_check_branch
      %24 = sbr.rel (0) target = $region25
    $region24: #{tpu_custom_call.1} parent=1 // pred_region
      _
    $region25: #{tpu_custom_call.1} parent=1 // pred_fallthru
      _
    // Predicated region
    $region26: #{tpu_custom_call.1} parent=1 // pred_check
      _
    $region27: #{tpu_custom_call.1} parent=1 // pred_check_branch
      %26 = sbr.rel (0) target = $region29
    $region28: #{tpu_custom_call.1} parent=1 // pred_region
      _
    $region29: #{tpu_custom_call.1} parent=1 // pred_fallthru
      _
    %v27 = vld [vmem:[%s0] sm:$0xff]
    %v28 = vld [vmem:[%s2] sm:$0xff]
    %v29 = vld [vmem:[%s1] sm:$0xff]
    %v30 = vld [vmem:[%s3] sm:$0xff]
    %vm31 = vcmask 64512
    %v33 = vsel %vm31, %v29, 0
    %35 = vmatprep.subr.mxu0 0.0
    %36 = vmatpush1.msra.mxu0 %v30
    %37 = vmatprep.subr.mxu0 0.0
    %38 = vmatpush1.msra.mxu0 0.0
    %39 = vmatprep.subr.mxu0 0.0
    %40 = vmatpush1.msra.mxu0 0.0
    %41 = vmatprep.subr.mxu0 0.0
    %42 = vmatpush1.msra.mxu0 0.0
    %43 = vmatprep.subr.mxu0 0.0
    %44 = vmatpush1.msra.mxu0 0.0
    %45 = vmatprep.subr.mxu0 0.0
    %46 = vmatpush1.msra.mxu0 0.0
    %47 = vmatprep.subr.mxu0 0.0
    %48 = vmatpush1.msra.mxu0 0.0
    %49 = vmatprep.subr.mxu0 0.0
    %50 = vmatpush1.msra.mxu0 0.0
    %51 = vmatprep.subr.mxu0 0.0
    %52 = vmatpush1.msra.mxu0 0.0
    %53 = vmatprep.subr.mxu0 0.0
    %54 = vmatpush1.msra.mxu0 0.0
    %55 = vmatprep.subr.mxu0 0.0
    %56 = vmatpush1.msra.mxu0 0.0
    %57 = vmatprep.subr.mxu0 0.0
    %58 = vmatpush1.msra.mxu0 0.0
    %59 = vmatprep.subr.mxu0 0.0
    %60 = vmatpush1.msra.mxu0 0.0
    %61 = vmatprep.subr.mxu0 0.0
    %62 = vmatpush1.msra.mxu0 0.0
    %63 = vmatprep.subr.mxu0 0.0
    %64 = vmatpush1.msra.mxu0 0.0
    %65 = vmatprep.subr.mxu0 0.0
    %66 = vmatpush1.msra.mxu0 0.0
    %67 = vmatprep.subr.mxu0 0.0
    %68 = vmatpush1.msra.mxu0 0.0
    %69 = vmatprep.subr.mxu0 0.0
    %70 = vmatpush1.msra.mxu0 0.0
    %71 = vmatprep.subr.mxu0 0.0
    %72 = vmatpush1.msra.mxu0 0.0
    %73 = vmatprep.subr.mxu0 0.0
    %74 = vmatpush1.msra.mxu0 0.0
    %75 = vmatprep.subr.mxu0 0.0
    %76 = vmatpush1.msra.mxu0 0.0
    %77 = vmatprep.subr.mxu0 0.0
    %78 = vmatpush1.msra.mxu0 0.0
    %79 = vmatprep.subr.mxu0 0.0
    %80 = vmatpush1.msra.mxu0 0.0
    %81 = vmatprep.subr.mxu0 0.0
    %82 = vmatpush1.msra.mxu0 0.0
    %83 = vmatprep.subr.mxu0 0.0
    %84 = vmatpush1.msra.mxu0 0.0
    %85 = vmatprep.subr.mxu0 0.0
    %86 = vmatpush1.msra.mxu0 0.0
    %87 = vmatprep.subr.mxu0 0.0
    %88 = vmatpush1.msra.mxu0 0.0
    %89 = vmatprep.subr.mxu0 0.0
    %90 = vmatpush1.msra.mxu0 0.0
    %91 = vmatprep.subr.mxu0 0.0
    %92 = vmatpush1.msra.mxu0 0.0
    %93 = vmatprep.subr.mxu0 0.0
    %94 = vmatpush1.msra.mxu0 0.0
    %95 = vmatprep.subr.mxu0 0.0
    %96 = vmatpush1.msra.mxu0 0.0
    %97 = vmatprep.subr.mxu0 0.0
    %98 = vmatpush1.msra.mxu0 0.0
    %99 = vmatprep.mubr.f32.mxu0 0.0
    %100 = vmatmul.mubr.f32.gmra.mrb[0].mxu0 %v33
    %v101 = vpop.f32.mrb[0].mxu0
    %v102 = vadd.f32 0.0, %v101
    %v103 = vpop.f32.mrb[0].mxu0
    %104 = vdwg.mxu0
    %v106 = vsel %vm31, %v27, 0
    %108 = vmatprep.subr.mxu0 0.0
    %109 = vmatpush1.msra.mxu0 %v28
    %110 = vmatprep.subr.mxu0 0.0
    %111 = vmatpush1.msra.mxu0 0.0
    %112 = vmatprep.subr.mxu0 0.0
    %113 = vmatpush1.msra.mxu0 0.0
    %114 = vmatprep.subr.mxu0 0.0
    %115 = vmatpush1.msra.mxu0 0.0
    %116 = vmatprep.subr.mxu0 0.0
    %117 = vmatpush1.msra.mxu0 0.0
    %118 = vmatprep.subr.mxu0 0.0
    %119 = vmatpush1.msra.mxu0 0.0
    %120 = vmatprep.subr.mxu0 0.0
    %121 = vmatpush1.msra.mxu0 0.0
    %122 = vmatprep.subr.mxu0 0.0
    %123 = vmatpush1.msra.mxu0 0.0
    %124 = vmatprep.subr.mxu0 0.0
    %125 = vmatpush1.msra.mxu0 0.0
    %126 = vmatprep.subr.mxu0 0.0
    %127 = vmatpush1.msra.mxu0 0.0
    %128 = vmatprep.subr.mxu0 0.0
    %129 = vmatpush1.msra.mxu0 0.0
    %130 = vmatprep.subr.mxu0 0.0
    %131 = vmatpush1.msra.mxu0 0.0
    %132 = vmatprep.subr.mxu0 0.0
    %133 = vmatpush1.msra.mxu0 0.0
    %134 = vmatprep.subr.mxu0 0.0
    %135 = vmatpush1.msra.mxu0 0.0
    %136 = vmatprep.subr.mxu0 0.0
    %137 = vmatpush1.msra.mxu0 0.0
    %138 = vmatprep.subr.mxu0 0.0
    %139 = vmatpush1.msra.mxu0 0.0
    %140 = vmatprep.subr.mxu0 0.0
    %141 = vmatpush1.msra.mxu0 0.0
    %142 = vmatprep.subr.mxu0 0.0
    %143 = vmatpush1.msra.mxu0 0.0
    %144 = vmatprep.subr.mxu0 0.0
    %145 = vmatpush1.msra.mxu0 0.0
    %146 = vmatprep.subr.mxu0 0.0
    %147 = vmatpush1.msra.mxu0 0.0
    %148 = vmatprep.subr.mxu0 0.0
    %149 = vmatpush1.msra.mxu0 0.0
    %150 = vmatprep.subr.mxu0 0.0
    %151 = vmatpush1.msra.mxu0 0.0
    %152 = vmatprep.subr.mxu0 0.0
    %153 = vmatpush1.msra.mxu0 0.0
    %154 = vmatprep.subr.mxu0 0.0
    %155 = vmatpush1.msra.mxu0 0.0
    %156 = vmatprep.subr.mxu0 0.0
    %157 = vmatpush1.msra.mxu0 0.0
    %158 = vmatprep.subr.mxu0 0.0
    %159 = vmatpush1.msra.mxu0 0.0
    %160 = vmatprep.subr.mxu0 0.0
    %161 = vmatpush1.msra.mxu0 0.0
    %162 = vmatprep.subr.mxu0 0.0
    %163 = vmatpush1.msra.mxu0 0.0
    %164 = vmatprep.subr.mxu0 0.0
    %165 = vmatpush1.msra.mxu0 0.0
    %166 = vmatprep.subr.mxu0 0.0
    %167 = vmatpush1.msra.mxu0 0.0
    %168 = vmatprep.subr.mxu0 0.0
    %169 = vmatpush1.msra.mxu0 0.0
    %170 = vmatprep.subr.mxu0 0.0
    %171 = vmatpush1.msra.mxu0 0.0
    %172 = vmatprep.mubr.f32.mxu0 0.0
    %173 = vmatmul.mubr.f32.gmra.mrb[0].mxu0 %v106
    %v174 = vpop.f32.mrb[0].mxu0
    %v175 = vadd.f32 %v102, %v174
    %v176 = vpop.f32.mrb[0].mxu0
    %177 = vdwg.mxu0
    %v178 = vld [vmem:[%s4] sm:$0x1]
    %v180 = vlaneseq
    %v181 = vshrl.u32 %v180, 7
    %v182 = vsub.s32 0, %v181
    %v183 = vrot.slane %v178, %v182
    %v185 = vadd.f32 %v175, %v183
    %v186 = vtanh.pop %v185
    %v187 = vld [vmem:[%s5] sm:$0xff]
    %v188 = vld [vmem:[%s5 + $0x8] sm:$0xff]
    %v189 = vld [vmem:[%s5 + $0x10] sm:$0xff]
    %v190 = vld [vmem:[%s5 + $0x18] sm:$0xff]
    %v191 = vld [vmem:[%s5 + $0x20] sm:$0xff]
    %v192 = vld [vmem:[%s5 + $0x28] sm:$0xff]
    %v193 = vld [vmem:[%s5 + $0x30] sm:$0xff]
    %v194 = vld [vmem:[%s5 + $0x38] sm:$0xff]
    %v195 = vld [vmem:[%s5 + $0x40] sm:$0xff]
    %v196 = vld [vmem:[%s5 + $0x48] sm:$0xff]
    %v197 = vld [vmem:[%s5 + $0x50] sm:$0xff]
    %v198 = vld [vmem:[%s5 + $0x58] sm:$0xff]
    %v199 = vld [vmem:[%s5 + $0x60] sm:$0xff]
    %v200 = vld [vmem:[%s5 + $0x68] sm:$0xff]
    %v201 = vld [vmem:[%s5 + $0x70] sm:$0xff]
    %v202 = vld [vmem:[%s5 + $0x78] sm:$0xff]
    %v203 = vld [vmem:[%s6] sm:$0x1]
    %v205 = vlaneseq
    %v206 = vshrl.u32 %v205, 7
    %v207 = vsub.s32 0, %v206
    %v208 = vrot.slane %v203, %v207
    %210 = vmatprep.subr.mxu0 0.0
    %211 = vmatpush1.msra.mxu0 %v187
    %212 = vmatprep.subr.mxu0 0.0
    %213 = vmatpush1.msra.mxu0 %v188
    %214 = vmatprep.subr.mxu0 0.0
    %215 = vmatpush1.msra.mxu0 %v189
    %216 = vmatprep.subr.mxu0 0.0
    %217 = vmatpush1.msra.mxu0 %v190
    %218 = vmatprep.subr.mxu0 0.0
    %219 = vmatpush1.msra.mxu0 %v191
    %220 = vmatprep.subr.mxu0 0.0
    %221 = vmatpush1.msra.mxu0 %v192
    %222 = vmatprep.subr.mxu0 0.0
    %223 = vmatpush1.msra.mxu0 %v193
    %224 = vmatprep.subr.mxu0 0.0
    %225 = vmatpush1.msra.mxu0 %v194
    %226 = vmatprep.subr.mxu0 0.0
    %227 = vmatpush1.msra.mxu0 %v195
    %228 = vmatprep.subr.mxu0 0.0
    %229 = vmatpush1.msra.mxu0 %v196
    %230 = vmatprep.subr.mxu0 0.0
    %231 = vmatpush1.msra.mxu0 %v197
    %232 = vmatprep.subr.mxu0 0.0
    %233 = vmatpush1.msra.mxu0 %v198
    %234 = vmatprep.subr.mxu0 0.0
    %235 = vmatpush1.msra.mxu0 %v199
    %236 = vmatprep.subr.mxu0 0.0
    %237 = vmatpush1.msra.mxu0 %v200
    %238 = vmatprep.subr.mxu0 0.0
    %239 = vmatpush1.msra.mxu0 %v201
    %240 = vmatprep.subr.mxu0 0.0
    %241 = vmatpush1.msra.mxu0 %v202
    %242 = vmatprep.subr.mxu0 0.0
    %243 = vmatpush1.msra.mxu0 0.0
    %244 = vmatprep.subr.mxu0 0.0
    %245 = vmatpush1.msra.mxu0 0.0
    %246 = vmatprep.subr.mxu0 0.0
    %247 = vmatpush1.msra.mxu0 0.0
    %248 = vmatprep.subr.mxu0 0.0
    %249 = vmatpush1.msra.mxu0 0.0
    %250 = vmatprep.subr.mxu0 0.0
    %251 = vmatpush1.msra.mxu0 0.0
    %252 = vmatprep.subr.mxu0 0.0
    %253 = vmatpush1.msra.mxu0 0.0
    %254 = vmatprep.subr.mxu0 0.0
    %255 = vmatpush1.msra.mxu0 0.0
    %256 = vmatprep.subr.mxu0 0.0
    %257 = vmatpush1.msra.mxu0 0.0
    %258 = vmatprep.subr.mxu0 0.0
    %259 = vmatpush1.msra.mxu0 0.0
    %260 = vmatprep.subr.mxu0 0.0
    %261 = vmatpush1.msra.mxu0 0.0
    %262 = vmatprep.subr.mxu0 0.0
    %263 = vmatpush1.msra.mxu0 0.0
    %264 = vmatprep.subr.mxu0 0.0
    %265 = vmatpush1.msra.mxu0 0.0
    %266 = vmatprep.subr.mxu0 0.0
    %267 = vmatpush1.msra.mxu0 0.0
    %268 = vmatprep.subr.mxu0 0.0
    %269 = vmatpush1.msra.mxu0 0.0
    %270 = vmatprep.subr.mxu0 0.0
    %271 = vmatpush1.msra.mxu0 0.0
    %272 = vmatprep.subr.mxu0 0.0
    %273 = vmatpush1.msra.mxu0 0.0
    %274 = vmatprep.mubr.f32.mxu0 0.0
    %275 = vmatmul.mubr.f32.gmra.mrb[0].mxu0 %v186
    %v276 = vpop.f32.mrb[0].mxu0
    %v277 = vadd.f32 %v208, %v276
    %v278 = vpop.f32.mrb[0].mxu0
    %279 = vdwg.mxu0
    %vm280 = vcmask 130048
    %281 = vst.msk [vmem:[#allocation2] sm:$0xff] %vm280, %v277
    // Predicated region
    $region30: #{tpu_custom_call.1} parent=1 // pred_check
      _
    $region31: #{tpu_custom_call.1} parent=1 // pred_check_branch
      %283 = sbr.rel (0) target = $region33
    $region32: #{tpu_custom_call.1} parent=1 // pred_region
      %s285 = ssub.s32 128, 128
      %286 = vsyncadd [#allocation3], %s285
      %s288 = sshll.u32 [#allocation2], 4
      %s289 = int_to_ptr.vmem [resolvable:$true] %s288
      %291 = dma.vmem_to_hbm [thread:$0]  %s289, 128, %s7, [#allocation3]
    $region33: #{tpu_custom_call.1} parent=1 // pred_fallthru
      _
    // Predicated region
    $region34: #{tpu_custom_call.1} parent=1 // pred_check
      _
    $region35: #{tpu_custom_call.1} parent=1 // pred_check_branch
      %293 = sbr.rel (0) target = $region37
    $region36: #{tpu_custom_call.1} parent=1 // pred_region
      %294 = dma.done [#allocation3], 128
    $region37: #{tpu_custom_call.1} parent=1 // pred_fallthru
      _
    %295 = vsyncpa [#allocation3], 1

</llo_original>
